<compile_context>
chip_gen: v5e
topology: v5e:2x2
jax: 0.10.0
libtpu: 0.0.40
codegen_flags: <defaults>
</compile_context>

<pallas_src>
import math

import jax
import jax.numpy as jnp
from jax import lax
from jax.experimental import pallas as pl
from jax.experimental.pallas import tpu as pltpu


# ----------------------------------------------------------------------------
# Kernel body (shared by the standard 2-D-block path and the tiny-C 3-D path).
#   x_ref: (C, TL)        or (C, TS, 128)
#   g_ref: (C, 1)         or (C, 1, 1)
#   o_ref: same shape/dtype as x_ref's block
# Channel axis is always axis 0 of the block.
# ----------------------------------------------------------------------------
def _rmsnorm_kernel(x_ref, g_ref, o_ref):
    x = x_ref[...]
    x32 = x.astype(jnp.float32)
    c = x.shape[0]

    # Sum of squares over the channel axis (f32 accumulation always).
    sq_sum = jnp.sum(x32 * x32, axis=0, keepdims=True)

    # torch F.normalize clamps the norm at 1e-12; clamping the squared sum at
    # 1e-24 is equivalent.  rsqrt goes to the EUP (its own issue slot).
    inv = lax.rsqrt(jnp.maximum(sq_sum, jnp.float32(1e-24)))

    # Fold sqrt(C) into the per-channel gain (C elements) instead of the
    # per-lane scale (TL elements) — free micro-opt.
    gs = g_ref[...].astype(jnp.float32) * jnp.float32(math.sqrt(c))

    if o_ref.dtype == jnp.bfloat16:
        # bf16 fast path: bulk elementwise math + store stay bf16.
        y = x * gs.astype(jnp.bfloat16) * inv.astype(jnp.bfloat16)
        o_ref[...] = y
    else:
        o_ref[...] = (x32 * gs * inv).astype(o_ref.dtype)


# ----------------------------------------------------------------------------
# Tile-size selection.
# ----------------------------------------------------------------------------
_TARGET_BLOCK_BYTES = 2 << 20   # ~2 MiB x-block; ~4x (in+out, double-buffered)
_MIN_GRID_STEPS = 8             # keep the pipeline fed / both v7x TCs busy


def _pick_tile_l(b: int, c: int, l: int, itemsize: int) -> int:
    """Lane-tile for the standard (C, TL) layout: multiple of 128, or == L."""
    if l <= 128:
        return l                                    # full extent, layout-legal
    tl = (_TARGET_BLOCK_BYTES // max(1, c * itemsize)) // 128 * 128
    tl = max(128, min(tl, 4096))
    l128 = pl.cdiv(l, 128) * 128
    tl = min(tl, l128)
    # Guarantee enough grid steps for DMA/compute overlap and v7x dual-TC.
    while b * pl.cdiv(l, tl) < _MIN_GRID_STEPS and tl > 512:
        tl = max(512, (tl // 2) // 128 * 128)
    return l if tl >= l else tl


def _pick_tile_s(b: int, c: int, nl: int, itemsize: int) -> int:
    """Sublane-tile (count of 128-lane columns) for the tiny-C layout."""
    bytes_per_col = c * 128 * itemsize
    ts = max(8, (_TARGET_BLOCK_BYTES // max(1, bytes_per_col)) // 8 * 8)
    ts = min(ts, nl)
    if ts != nl:
        ts = max(8, (ts // 8) * 8)                  # multiple of 8 unless full
    while b * pl.cdiv(nl, ts) < _MIN_GRID_STEPS and ts > 8:
        ts = max(8, (ts // 2) // 8 * 8)
    return ts


# ----------------------------------------------------------------------------
# pallas_call helper.
# ----------------------------------------------------------------------------
def _call(x_in, g_in, out_shape, grid, in_specs, out_spec, block_bytes):
    # Double-buffered in + out blocks (+ resident g).
    footprint = 4 * block_bytes + 2 * g_in.size * g_in.dtype.itemsize
    extra = {}
    if footprint > 12 * 1024 * 1024:
        # Huge-C corner: raise scoped-VMEM limit (defaults: 16 MiB v5e,
        # 32 MiB v6e/v7x) with headroom, capped below v7x's 64 MiB physical.
        extra["vmem_limit_bytes"] = min(int(footprint * 3 // 2), 56 * 1024 * 1024)
    return pl.pallas_call(
        _rmsnorm_kernel,
        out_shape=out_shape,
        grid_spec=pltpu.PrefetchScalarGridSpec(
            num_scalar_prefetch=0,
            grid=grid,
            in_specs=in_specs,
            out_specs=out_spec,
        ),
        compiler_params=pltpu.CompilerParams(
            dimension_semantics=("parallel", "parallel"), **extra),
    )(x_in, g_in)


# ----------------------------------------------------------------------------
# Public wrapper.
# ----------------------------------------------------------------------------
def rms_norm(x: jax.Array, g: jax.Array, *, tile_l: int | None = None) -> jax.Array:
    """x: (B, C, L), g: (1, C, 1) -> (B, C, L)."""
    b, c, l = x.shape
    assert g.shape == (1, c, 1)
    itemsize = x.dtype.itemsize

    # ---- tiny-C path: repack lanes/sublanes fully regardless of C ----------
    if tile_l is None and c * itemsize < 32 and l >= 1024 and l % 128 == 0:
        nl = l // 128
        ts = _pick_tile_s(b, c, nl, itemsize)
        x4 = x.reshape(b, c, nl, 128)               # free metadata reshape
        g3 = g.reshape(c, 1, 1)
        grid = (b, pl.cdiv(nl, ts))
        out = _call(
            x4, g3,
            jax.ShapeDtypeStruct((b, c, nl, 128), x.dtype),
            grid,
            [
                pl.BlockSpec((None, c, ts, 128), lambda i, j: (i, 0, j, 0)),
                pl.BlockSpec((c, 1, 1), lambda i, j: (0, 0, 0)),   # resident
            ],
            pl.BlockSpec((None, c, ts, 128), lambda i, j: (i, 0, j, 0)),
            block_bytes=c * ts * 128 * itemsize,
        )
        return out.reshape(b, c, l)

    # ---- standard path: (C, TL) blocks, channels on sublanes ---------------
    if tile_l is None:
        tl = _pick_tile_l(b, c, l, itemsize)
    else:
        assert tile_l == l or tile_l % 128 == 0, "tile_l must be 128-multiple or == L"
        tl = tile_l
    grid = (b, pl.cdiv(l, tl))
    return _call(
        x, g,
        jax.ShapeDtypeStruct((b, c, l), x.dtype),
        grid,
        [
            pl.BlockSpec((None, c, tl), lambda i, j: (i, 0, j)),
            pl.BlockSpec((None, c, 1), lambda i, j: (0, 0, 0)),     # resident
        ],
        pl.BlockSpec((None, c, tl), lambda i, j: (i, 0, j)),
        block_bytes=c * tl * itemsize,
    )


# ----------------------------------------------------------------------------
# Pure-JAX reference (torch.nn.functional.normalize semantics).
# ----------------------------------------------------------------------------
def rms_norm_ref(x: jax.Array, g: jax.Array) -> jax.Array:
    c = x.shape[1]
    xf = x.astype(jnp.float32)
    norm = jnp.maximum(jnp.sqrt(jnp.sum(xf * xf, axis=1, keepdims=True)), 1e-12)
    return (xf / norm * g.astype(jnp.float32) * math.sqrt(c)).astype(x.dtype)


if __name__ == "__main__":
    key = jax.random.PRNGKey(0)
    k1, k2, k3, k4, k5, k6 = jax.random.split(key, 6)

    def check(out, ref, tol):
        assert out.shape == ref.shape and out.dtype == ref.dtype
        assert jnp.allclose(out.astype(jnp.float32), ref.astype(jnp.float32),
                            atol=tol, rtol=tol), "mismatch vs reference"

    # 1) Demo shape from the module: (B=2, C=4, L=16), g = ones (init value).
    B, C, L = 2, 4, 16
    x = jax.random.normal(k1, (B, C, L), dtype=jnp.float32)
    g = jnp.ones((1, C, 1), dtype=jnp.float32)
    out = jax.block_until_ready(rms_norm(x, g))
    check(out, rms_norm_ref(x, g), 1e-5)

    # 2) f32, standard path with lane tiling + ragged tail, random g.
    x2 = jax.random.normal(k2, (2, 32, 800), dtype=jnp.float32)
    g2 = jax.random.normal(k3, (1, 32, 1), dtype=jnp.float32)
    out2 = jax.block_until_ready(rms_norm(x2, g2))
    check(out2, rms_norm_ref(x2, g2), 1e-5)

    # 3) f32, tiny-C reshaped path (C=4, L=1024), random g.
    x3 = jax.random.normal(k4, (2, 4, 1024), dtype=jnp.float32)
    g3 = jax.random.normal(k5, (1, 4, 1), dtype=jnp.float32)
    out3 = jax.block_until_ready(rms_norm(x3, g3))
    check(out3, rms_norm_ref(x3, g3), 1e-5)

    # 4) bf16 fast path, standard layout.
    x4 = jax.random.normal(k6, (2, 16, 640), dtype=jnp.float32).astype(jnp.bfloat16)
    g4 = jnp.ones((1, 16, 1), dtype=jnp.bfloat16)
    out4 = jax.block_until_ready(rms_norm(x4, g4))
    check(out4, rms_norm_ref(x4, g4), 1e-1)

    # 5) bf16 fast path, tiny-C layout.
    x5 = jax.random.normal(k1, (2, 4, 2048), dtype=jnp.float32).astype(jnp.bfloat16)
    g5 = jnp.ones((1, 4, 1), dtype=jnp.bfloat16)
    out5 = jax.block_until_ready(rms_norm(x5, g5))
    check(out5, rms_norm_ref(x5, g5), 1e-1)

    print("KERNEL_OK")
</pallas_src>

<mosaic_0001>
module attributes {stable_mosaic.version = 11 : i64} {
  func.func @_rmsnorm_kernel(%arg0: i32, %arg1: i32, %arg2: memref<1x4x16xf32, #tpu.memory_space<vmem>>, %arg3: memref<1x4x1xf32, #tpu.memory_space<vmem>>, %arg4: memref<1x4x16xf32, #tpu.memory_space<vmem>>) attributes {dimension_semantics = [#tpu.dimension_semantics<parallel>, #tpu.dimension_semantics<parallel>], iteration_bounds = array<i64: 2, 1>, scalar_prefetch = 0 : i64, scratch_operands = 0 : i64, tpu.core_type = #tpu.core_type<tc>, window_params = [{transform_indices = @transform_0, window_bounds = array<i64: 1, 4, 16>}, {pipeline_mode = #tpu.pipeline_mode<synchronous>, transform_indices = @transform_1, window_bounds = array<i64: 1, 4, 1>}, {transform_indices = @transform_2, window_bounds = array<i64: 1, 4, 16>}]} {
    %c0 = arith.constant 0 : index
    %c0_0 = arith.constant 0 : index
    %c0_1 = arith.constant 0 : index
    %0 = vector.load %arg2[%c0, %c0_0, %c0_1] : memref<1x4x16xf32, #tpu.memory_space<vmem>>, vector<1x4x16xf32>
    %1 = vector.shape_cast %0 : vector<1x4x16xf32> to vector<4x16xf32>
    %2 = arith.mulf %1, %1 : vector<4x16xf32>
    %cst = arith.constant dense<0.000000e+00> : vector<16xf32>
    %3 = vector.multi_reduction <add>, %2, %cst [0] : vector<4x16xf32> to vector<16xf32>
    %4 = vector.shape_cast %3 : vector<16xf32> to vector<1x16xf32>
    %cst_2 = arith.constant 1.000000e-24 : f32
    %5 = vector.broadcast %cst_2 : f32 to vector<1x16xf32>
    %6 = arith.maximumf %4, %5 : vector<1x16xf32>
    %7 = math.rsqrt %6 : vector<1x16xf32>
    %c0_3 = arith.constant 0 : index
    %c0_4 = arith.constant 0 : index
    %c0_5 = arith.constant 0 : index
    %8 = vector.load %arg3[%c0_3, %c0_4, %c0_5] : memref<1x4x1xf32, #tpu.memory_space<vmem>>, vector<1x4x1xf32>
    %9 = vector.shape_cast %8 : vector<1x4x1xf32> to vector<4x1xf32>
    %cst_6 = arith.constant 2.000000e+00 : f32
    %10 = vector.broadcast %cst_6 : f32 to vector<4x1xf32>
    %11 = arith.mulf %9, %10 : vector<4x1xf32>
    %12 = vector.broadcast %11 : vector<4x1xf32> to vector<4x16xf32>
    %13 = arith.mulf %1, %12 : vector<4x16xf32>
    %14 = vector.broadcast %7 : vector<1x16xf32> to vector<4x16xf32>
    %15 = arith.mulf %13, %14 : vector<4x16xf32>
    %c0_7 = arith.constant 0 : index
    %c0_8 = arith.constant 0 : index
    %c0_9 = arith.constant 0 : index
    %16 = vector.load %arg4[%c0_7, %c0_8, %c0_9] : memref<1x4x16xf32, #tpu.memory_space<vmem>>, vector<1x4x16xf32>
    %17 = vector.shape_cast %16 : vector<1x4x16xf32> to vector<4x16xf32>
    %18 = vector.shape_cast %15 : vector<4x16xf32> to vector<1x4x16xf32>
    tpu.vector_store %arg4[%c0_7, %c0_8, %c0_9], %18 {strides = array<i32>} : memref<1x4x16xf32, #tpu.memory_space<vmem>>, vector<1x4x16xf32>,
    return
  }
  func.func @transform_0(%arg0: i32, %arg1: i32) -> (i32, i32, i32) {
    %c0_i32 = arith.constant 0 : i32
    %c0_i32_0 = arith.constant 0 : i32
    return %arg0, %c0_i32, %arg1 : i32, i32, i32
  }
  func.func @transform_1(%arg0: i32, %arg1: i32) -> (i32, i32, i32) {
    %c0_i32 = arith.constant 0 : i32
    %c0_i32_0 = arith.constant 0 : i32
    %c0_i32_1 = arith.constant 0 : i32
    %c0_i32_2 = arith.constant 0 : i32
    return %c0_i32, %c0_i32_0, %c0_i32_1 : i32, i32, i32
  }
  func.func @transform_2(%arg0: i32, %arg1: i32) -> (i32, i32, i32) {
    %c0_i32 = arith.constant 0 : i32
    %c0_i32_0 = arith.constant 0 : i32
    return %arg0, %c0_i32, %arg1 : i32, i32, i32
  }
}

</mosaic_0001>

<llo_original>
// kernel: tpu_custom_call.1
$region0: #{tpu_custom_call.1}
  #allocation0 [shape = 'u32[]', space=smem, size = 0x4, offset = 0x4, fixed_abs, tag = 'smem constant byte address 0x4 - core index']
  #allocation1 [shape = 'u32[72,128]{1,0:T(1,128)}', space=vmem, size = 0x9000, scoped, tag = 'internal scratch']
  %s0 = inlined_call_operand.hbm [shape: f32[2,4,16], index: 0, kind: input, shape index: {}]
  %s1 = inlined_call_operand.vmem [shape: f32[1,4,1], index: 1, kind: input, shape index: {}]
  %s2 = inlined_call_operand.hbm [shape: f32[2,4,16], index: 2, kind: output, shape index: {}]
  %s3 = sld [smem:[#allocation0]]
  $region45: #{tpu_custom_call.1} parent=0
    _
  %s5 = ssub.s32 1, %s3
  %s6 = scalar_select 0, %s5, %s3
  $region1: #{tpu_custom_call.1} parent=0
    #allocation2 [shape = 'u8[4096]{0}', space=vmem, size = 0x1000, scoped, tag = 'input window, operand 0']
    #allocation3 [shape = 's32[2]{0}', space=sflag, size = 0x8, scoped, tag = 'scoped memory for tpu_custom_call.1']
    #allocation4 [shape = 's32[2]{0}', space=sflag, size = 0x8, scoped, tag = 'scoped memory for tpu_custom_call.1']
    #allocation5 [shape = 'u8[4096]{0}', space=vmem, size = 0x1000, scoped, tag = 'output window, operand 0']
    %7 = vsyncpa [#allocation3], 0
    %s8 = scalar_lea.sflag [#allocation3], 1
    %9 = vsyncpa %s8, 0
    %10 = vsyncpa [#allocation4], 0
    %s11 = scalar_lea.sflag [#allocation4], 1
    %12 = vsyncpa %s11, 0
    loop: start=0, step=1, limit=4
    $region2: #{tpu_custom_call.1} parent=1 // loop_pre_header
      _
    $region3: #{tpu_custom_call.1} parent=1 // loop_header
      %s14 = sphi 0, %s18
      %p15 = scmp.ge.s32.totalorder %s14, 4
      %s21 = sphi 0, %s33
      %s22 = sphi 0, %s29
      %s23 = sphi 0, %s21
      %s24 = sphi 0, %s22
      %s25 = sphi 0, %s23
      %s26 = sphi 0, %s24
      %s38 = sphi 0, %s40
      %s41 = sphi 0, %s38
      %s42 = sphi 0, %s41
      %s58 = sphi 0, %s42
      %s62 = sphi 0, %s62
      %s64 = sphi 0, %s62
      %s65 = sphi 0, %s64
      %s79 = sphi 0, %s65
      %s87 = sphi 0, %s89
      %s90 = sphi 0, %s87
      %s91 = sphi 0, %s90
      %s107 = sphi 0, %s91
    $region4: #{tpu_custom_call.1} parent=1 // loop_header_branch
      %17 = sbr.rel (%p15) target = $region8
    $region5: #{tpu_custom_call.1} parent=1 // loop_body
      %s19 = ssub.s32 %s14, 1
      %s20 = ssub.s32 %s14, 2
      %s27 = sadd.s32 1, %s22
      %p28 = scmp.ge.s32.totalorder %s27, 1
      %s29 = scalar_select %p28, 0, %s27
      %s30 = sadd.s32 1, %s21
      %s31 = scalar_select %p28, %s30, %s21
      %p32 = scmp.ge.s32.totalorder %s31, 2
      %s33 = scalar_select %p32, 0, %s31
      %s34 = ssub.s32 %s21, %s33
      %s35 = ssub.s32 %s22, %s29
      %s36 = sor.u32 %s34, %s35
      %p37 = scmp.eq.s32.totalorder %s36, 0
      %s39 = sadd.s32 %s38, 1
      %s40 = scalar_select %p37, %s38, %s39
      %p43 = pneg %p37
      %p44 = scmp.eq.s32.totalorder %s14, 1
      %p45 = por %p43, %p44
      %p46 = scmp.ne.s32.totalorder %s38, %s41
      %p47 = scmp.eq.s32.totalorder %s14, 0
      %p48 = por %p46, %p47
      %p49 = scmp.ne.s32.totalorder %s38, %s41
      %p50 = scmp.eq.s32.totalorder %s19, 1
      %p51 = por %p49, %p50
      %p52 = scmp.ne.s32.totalorder %s41, %s42
      %p53 = scmp.eq.s32.totalorder %s19, 0
      %p54 = por %p52, %p53
      %p55 = scmp.ne.s32.totalorder %s41, %s42
      %p56 = scmp.eq.s32.totalorder %s20, 1
      %p57 = por %p55, %p56
      %p59 = scmp.ne.s32.totalorder %s42, %s58
      %p60 = scmp.eq.s32.totalorder %s20, 0
      %p61 = por %p59, %p60
      %s63 = sadd.s32 %s62, 1
      %p66 = scmp.eq.s32.totalorder %s14, 1
      %p67 = scmp.ne.s32.totalorder %s62, %s64
      %p68 = scmp.eq.s32.totalorder %s14, 0
      %p69 = por %p67, %p68
      %p70 = scmp.ne.s32.totalorder %s62, %s64
      %p71 = scmp.eq.s32.totalorder %s19, 1
      %p72 = por %p70, %p71
      %p73 = scmp.ne.s32.totalorder %s64, %s65
      %p74 = scmp.eq.s32.totalorder %s19, 0
      %p75 = por %p73, %p74
      %p76 = scmp.ne.s32.totalorder %s64, %s65
      %p77 = scmp.eq.s32.totalorder %s20, 1
      %p78 = por %p76, %p77
      %p80 = scmp.ne.s32.totalorder %s65, %s79
      %p81 = scmp.eq.s32.totalorder %s20, 0
      %p82 = por %p80, %p81
      %s83 = ssub.s32 %s21, %s33
      %s84 = ssub.s32 %s22, %s29
      %s85 = sor.u32 %s83, %s84
      %p86 = scmp.eq.s32.totalorder %s85, 0
      %s88 = sadd.s32 %s87, 1
      %s89 = scalar_select %p86, %s87, %s88
      %p92 = pneg %p86
      %p93 = scmp.eq.s32.totalorder %s14, 1
      %p94 = por %p92, %p93
      %p95 = scmp.ne.s32.totalorder %s87, %s90
      %p96 = scmp.eq.s32.totalorder %s14, 0
      %p97 = por %p95, %p96
      %p98 = scmp.ne.s32.totalorder %s87, %s90
      %p99 = scmp.eq.s32.totalorder %s19, 1
      %p100 = por %p98, %p99
      %p101 = scmp.ne.s32.totalorder %s90, %s91
      %p102 = scmp.eq.s32.totalorder %s19, 0
      %p103 = por %p101, %p102
      %p104 = scmp.ne.s32.totalorder %s90, %s91
      %p105 = scmp.eq.s32.totalorder %s20, 1
      %p106 = por %p104, %p105
      %p108 = scmp.ne.s32.totalorder %s91, %s107
      %p109 = scmp.eq.s32.totalorder %s20, 0
      %p110 = por %p108, %p109
      %p111 = scmp.le.s32.totalorder 1, %s14
      %p112 = scmp.lt.s32.totalorder %s14, 3
      %p113 = pnand %p111, %p112
      %p114 = pneg %p113
      // Predicated region
      $region9: #{tpu_custom_call.1} parent=5 // pred_check
        _
      $region10: #{tpu_custom_call.1} parent=5 // pred_check_branch
        %116 = sbr.rel (%p113) target = $region12
      $region11: #{tpu_custom_call.1} parent=5 // pred_region
        %s117 = ssub.s32 %s14, 1
        // Predicated region
        $region13: #{tpu_custom_call.1} parent=11 // pred_check
          %p118 = pneg %p75
        $region14: #{tpu_custom_call.1} parent=11 // pred_check_branch
          %120 = sbr.rel (%p118) target = $region16
        $region15: #{tpu_custom_call.1} parent=11 // pred_region
          _
        $region16: #{tpu_custom_call.1} parent=11 // pred_fallthru
          _
      $region12: #{tpu_custom_call.1} parent=5 // pred_fallthru
        _
      %p121 = scmp.lt.s32.totalorder %s14, 2
      // Predicated region
      $region17: #{tpu_custom_call.1} parent=5 // pred_check
        %p122 = pneg %p121
      $region18: #{tpu_custom_call.1} parent=5 // pred_check_branch
        %124 = sbr.rel (%p122) target = $region20
      $region19: #{tpu_custom_call.1} parent=5 // pred_region
        // Predicated region
        $region21: #{tpu_custom_call.1} parent=19 // pred_check
          %p125 = pneg %p48
        $region22: #{tpu_custom_call.1} parent=19 // pred_check_branch
          %127 = sbr.rel (%p125) target = $region24
        $region23: #{tpu_custom_call.1} parent=19 // pred_region
          %s128 = sand.u32 %s38, 1
          %s129 = scalar_lea.sflag [#allocation3], %s128
          %s130 = sand.u32 %s38, 1
          %s131 = smul.addr %s130, 4
          %s132 = scalar_lea.vmem [#allocation2], %s131
          %134 = vsyncadd %s129, 0
          %s135 = sadd.s32 %s22, %s21
          %s136 = smul.addr %s135, 4
          %s137 = scalar_lea.hbm %s0, %s136
          %s139 = sshll.u32 %s137, 4
          %s140 = int_to_ptr.hbm [resolvable:$true] %s139
          %s141 = sshll.u32 %s132, 4
          %s142 = int_to_ptr.vmem [resolvable:$true] %s141
          %144 = dma.hbm_to_vmem [thread:$0]  %s140, 64, %s142, %s129
        $region24: #{tpu_custom_call.1} parent=19 // pred_fallthru
          _
      $region20: #{tpu_custom_call.1} parent=5 // pred_fallthru
        _
      %p145 = scmp.le.s32.totalorder 1, %s14
      %p146 = scmp.lt.s32.totalorder %s14, 3
      %p147 = pnand %p145, %p146
      %p148 = pneg %p147
      // Predicated region
      $region25: #{tpu_custom_call.1} parent=5 // pred_check
        _
      $region26: #{tpu_custom_call.1} parent=5 // pred_check_branch
        %150 = sbr.rel (%p147) target = $region28
      $region27: #{tpu_custom_call.1} parent=5 // pred_region
        %s151 = ssub.s32 %s14, 1
        %s152 = sand.u32 %s41, 1
        %s153 = scalar_lea.sflag [#allocation3], %s152
        %s154 = sand.u32 %s41, 1
        %s155 = smul.addr %s154, 4
        %s156 = scalar_lea.vmem [#allocation2], %s155
        // Predicated region
        $region29: #{tpu_custom_call.1} parent=27 // pred_check
          %p157 = pneg %p54
        $region30: #{tpu_custom_call.1} parent=27 // pred_check_branch
          %159 = sbr.rel (%p157) target = $region32
        $region31: #{tpu_custom_call.1} parent=27 // pred_region
          %161 = dma.done %s153, 64
        $region32: #{tpu_custom_call.1} parent=27 // pred_fallthru
          _
        %s162 = sand.u32 %s41, 1
        %s163 = scalar_lea.sflag [#allocation3], %s162
        %s164 = sand.u32 %s41, 1
        %s165 = smul.addr %s164, 4
        %s166 = scalar_lea.vmem [#allocation2], %s165
        %p167 = pneg %p54
        %p168 = pneg %p51
        %p169 = pneg %p75
        %p170 = pneg %p72
        %p171 = pneg %p103
        %p172 = pneg %p100
        %s173 = sand.u32 %s90, 1
        %s174 = scalar_lea.sflag [#allocation4], %s173
        %s175 = sand.u32 %s90, 1
        %s176 = smul.addr %s175, 4
        %s177 = scalar_lea.vmem [#allocation5], %s176
        %v178 = vld [vmem:[%s156] sm:$0xf]
        %v179 = vmul.f32 %v178, %v178
        %vm180 = vcmask 125952
        %v181 = vsel %vm180, %v179, 0.0
        %v182 = vrot.slane %v181, 4
        %v183 = vadd.f32 %v181, %v182
        %v184 = vrot.slane %v183, 2
        %v185 = vadd.f32 %v183, %v184
        %v186 = vrot.slane %v185, 1
        %v187 = vadd.f32 %v185, %v186
        %v188 = vmax.f32 %v187, 1e-24
        %v189 = vrsqrt.pop %v188
        %v190 = vmul.f32 %v189, %v188
        %v191 = vmul.f32 %v190, %v189
        %v192 = vmul.f32 0.5, %v191
        %v193 = vsub.f32 1.5, %v192
        %v194 = vmul.f32 %v189, %v193
        %vm195 = vweird.f32 %v188
        %vm196 = vweird.f32 %v189
        %vm197 = vmor %vm195, %vm196
        %v198 = vsel %vm197, %v189, %v194
        %v199 = vld [vmem:[%s1] sm:$0xf]
        %v200 = vmul.f32 %v199, 2.0
        %202 = vset.pattern.permute.xlu0 0
        %203 = vperm.xlu0 %202, %v200
        %v204 = vpop.permute.xlu0 %203
        %v206 = vmul.f32 %v178, %v204
        %v207 = vmul.f32 %v206, %v198
        %208 = vst.msk [vmem:[%s177] sm:$0xf] %vm180, %v207
        %s209 = sand.u32 %s90, 1
        %s210 = scalar_lea.sflag [#allocation4], %s209
        %s211 = sand.u32 %s90, 1
        %s212 = smul.addr %s211, 4
        %s213 = scalar_lea.vmem [#allocation5], %s212
        // Predicated region
        $region33: #{tpu_custom_call.1} parent=27 // pred_check
          %p214 = pneg %p100
        $region34: #{tpu_custom_call.1} parent=27 // pred_check_branch
          %216 = sbr.rel (%p214) target = $region36
        $region35: #{tpu_custom_call.1} parent=27 // pred_region
          %218 = vsyncadd %s210, 0
          %s219 = sadd.s32 %s24, %s23
          %s220 = smul.addr %s219, 4
          %s221 = scalar_lea.hbm %s2, %s220
          %s223 = sshll.u32 %s213, 4
          %s224 = int_to_ptr.vmem [resolvable:$true] %s223
          %s225 = sshll.u32 %s221, 4
          %s226 = int_to_ptr.hbm [resolvable:$true] %s225
          %228 = dma.vmem_to_hbm [thread:$0]  %s224, 64, %s226, %s210
        $region36: #{tpu_custom_call.1} parent=27 // pred_fallthru
          _
      $region28: #{tpu_custom_call.1} parent=5 // pred_fallthru
        _
      %p229 = scmp.le.s32.totalorder 2, %s14
      // Predicated region
      $region37: #{tpu_custom_call.1} parent=5 // pred_check
        %p230 = pneg %p229
      $region38: #{tpu_custom_call.1} parent=5 // pred_check_branch
        %232 = sbr.rel (%p230) target = $region40
      $region39: #{tpu_custom_call.1} parent=5 // pred_region
        %s233 = ssub.s32 %s14, 2
        // Predicated region
        $region41: #{tpu_custom_call.1} parent=39 // pred_check
          %p234 = pneg %p106
        $region42: #{tpu_custom_call.1} parent=39 // pred_check_branch
          %236 = sbr.rel (%p234) target = $region44
        $region43: #{tpu_custom_call.1} parent=39 // pred_region
          %s237 = sand.u32 %s91, 1
          %s238 = scalar_lea.sflag [#allocation4], %s237
          %s239 = sand.u32 %s91, 1
          %s240 = smul.addr %s239, 4
          %s241 = scalar_lea.vmem [#allocation5], %s240
          %243 = dma.done %s238, 64
        $region44: #{tpu_custom_call.1} parent=39 // pred_fallthru
          _
      $region40: #{tpu_custom_call.1} parent=5 // pred_fallthru
        _
    $region6: #{tpu_custom_call.1} parent=1 // loop_footer
      %s18 = sadd.s32 1, %s14
    $region7: #{tpu_custom_call.1} parent=1 // loop_footer_branch
      %13 = sbr.rel target = $region3
    $region8: #{tpu_custom_call.1} parent=1 // loop_exit
      _
    %244 = vsyncpa [#allocation3], 1
    %s245 = scalar_lea.sflag [#allocation3], 1
    %246 = vsyncpa %s245, 1
    %247 = vsyncpa [#allocation4], 1
    %s248 = scalar_lea.sflag [#allocation4], 1
    %249 = vsyncpa %s248, 1

</llo_original>
